<compile_context>
chip_gen: v7x
topology: tpu7x:2x2x1
jax: 0.10.0
libtpu: 0.0.40
codegen_flags: <defaults>
</compile_context>

<pallas_src>
import jax
import jax.numpy as jnp
from jax.experimental import pallas as pl
from jax.experimental.pallas import tpu as pltpu

IN_F = 7          # fc1 in_features
HID_F = 32        # fc1 out / fc2 in
OUT_F = 16        # fc2 out_features
PACK = 16         # logical rows packed per lane-dense physical row
PK_IN = PACK * IN_F     # 112
PK_OUT = PACK * OUT_F   # 256


def _siamese_kernel(x1_ref, x2_ref, w_ref, b_ref, o1_ref, o2_ref):
    """Both branches of y = x @ W_big + b_big using the same resident weights."""
    w = w_ref[...]
    b = b_ref[...]
    o1_ref[...] = (
        jnp.dot(x1_ref[...], w, preferred_element_type=jnp.float32) + b
    ).astype(o1_ref.dtype)
    o2_ref[...] = (
        jnp.dot(x2_ref[...], w, preferred_element_type=jnp.float32) + b
    ).astype(o2_ref.dtype)


def _choose_tile(n_packed, block_rows):
    if n_packed <= 8:
        return n_packed                      # single full-array block
    # keep >= 2 grid steps (v7x has 2 TensorCores), rounded to the 8-sublane grain
    half = ((-(-n_packed // 2)) + 7) // 8 * 8
    return max(8, min(block_rows, half))


def fuse_params(params):
    """Collapse fc1 -> dropout(eval) -> fc2 into one affine map, plus the
    16-way packed (block-diagonal) variants.  Done once, not per forward."""
    w1_t, b1, w2_t, b2 = params
    w_fused = w1_t @ w2_t                                          # (7, 16)
    b_fused = b1 @ w2_t + b2                                       # (16,)
    w_big = jnp.kron(jnp.eye(PACK, dtype=w_fused.dtype), w_fused)  # (112, 256)
    b_big = jnp.tile(b_fused, PACK).reshape(1, PK_OUT)             # (1, 256)
    return {
        "w": w_fused,
        "b": b_fused.reshape(1, OUT_F),
        "w_big": w_big,
        "b_big": b_big,
    }


def siamese_forward(x1, x2, fused, *, block_rows=512, min_rows_for_pallas=1024):
    """Single launch for both branches; returns (y1, y2) each (N, 16)."""
    assert x1.shape == x2.shape and x1.shape[1] == IN_F
    n = x1.shape[0]

    if n < min_rows_for_pallas or n % PACK != 0:
        # Tiny or ragged batch: pallas_call launch overhead dominates.
        # TODO(synk): fold n % 16 remainder rows into the Pallas path if large
        # ragged batches ever matter.
        y1 = x1 @ fused["w"] + fused["b"]
        y2 = x2 @ fused["w"] + fused["b"]
        return y1, y2

    n_packed = n // PACK
    x1p = x1.reshape(n_packed, PK_IN)          # free row-major views, no HBM copy
    x2p = x2.reshape(n_packed, PK_IN)

    tb = _choose_tile(n_packed, block_rows)
    grid = (pl.cdiv(n_packed, tb),)            # ragged last block is store-masked

    cost = pl.CostEstimate(
        flops=2 * 2 * n_packed * PK_IN * PK_OUT,
        transcendentals=0,
        bytes_accessed=4 * (2 * n_packed * (PK_IN + PK_OUT)
                            + PK_IN * PK_OUT + PK_OUT),
    )

    y1p, y2p = pl.pallas_call(
        _siamese_kernel,
        out_shape=(
            jax.ShapeDtypeStruct((n_packed, PK_OUT), jnp.float32),
            jax.ShapeDtypeStruct((n_packed, PK_OUT), jnp.float32),
        ),
        grid_spec=pltpu.PrefetchScalarGridSpec(
            num_scalar_prefetch=0,
            grid=grid,
            in_specs=[
                pl.BlockSpec((tb, PK_IN), lambda i: (i, 0)),      # x1 tile
                pl.BlockSpec((tb, PK_IN), lambda i: (i, 0)),      # x2 tile
                pl.BlockSpec((PK_IN, PK_OUT), lambda i: (0, 0)),  # W_big (resident)
                pl.BlockSpec((1, PK_OUT), lambda i: (0, 0)),      # b_big (resident)
            ],
            out_specs=[
                pl.BlockSpec((tb, PK_OUT), lambda i: (i, 0)),
                pl.BlockSpec((tb, PK_OUT), lambda i: (i, 0)),
            ],
        ),
        compiler_params=pltpu.CompilerParams(
            dimension_semantics=("parallel",),  # shards batch tiles over v7x's 2 TCs
        ),
        cost_estimate=cost,
    )(x1p, x2p, fused["w_big"], fused["b_big"])

    return y1p.reshape(n, OUT_F), y2p.reshape(n, OUT_F)


def init_params(key):
    """nn.Linear default init: U(-1/sqrt(fan_in), +1/sqrt(fan_in)); weights
    stored pre-transposed as (in, out)."""
    k1, k2, k3, k4 = jax.random.split(key, 4)
    lim1 = 1.0 / jnp.sqrt(float(IN_F))
    lim2 = 1.0 / jnp.sqrt(float(HID_F))
    w1_t = jax.random.uniform(k1, (IN_F, HID_F), jnp.float32, -lim1, lim1)
    b1 = jax.random.uniform(k2, (HID_F,), jnp.float32, -lim1, lim1)
    w2_t = jax.random.uniform(k3, (HID_F, OUT_F), jnp.float32, -lim2, lim2)
    b2 = jax.random.uniform(k4, (OUT_F,), jnp.float32, -lim2, lim2)
    return w1_t, b1, w2_t, b2


if __name__ == "__main__":
    key = jax.random.PRNGKey(0)
    kp, kx1, kx2 = jax.random.split(key, 3)
    params = init_params(kp)
    fused = fuse_params(params)                 # done once, not per forward

    B = 64                                      # small demo batch (multiple of 16)
    x1 = jax.random.normal(kx1, (B, IN_F), jnp.float32)
    x2 = jax.random.normal(kx2, (B, IN_F), jnp.float32)

    # force the Pallas path so the kernel is exercised even at demo size
    out1, out2 = siamese_forward(x1, x2, fused, min_rows_for_pallas=0)
    jax.block_until_ready((out1, out2))

    # reference: unfused, unpacked plain-JAX forward (dropout identity in eval)
    w1_t, b1, w2_t, b2 = params
    ref1 = (x1 @ w1_t + b1) @ w2_t + b2
    ref2 = (x2 @ w1_t + b1) @ w2_t + b2
    assert out1.shape == (B, OUT_F) and out2.shape == (B, OUT_F)
    assert jnp.allclose(out1, ref1, atol=1e-5)
    assert jnp.allclose(out2, ref2, atol=1e-5)

    # tiny-batch fast path sanity check (B=8 -> plain-XLA fallback)
    o1s, o2s = siamese_forward(x1[:8], x2[:8], fused)
    jax.block_until_ready((o1s, o2s))
    assert jnp.allclose(o1s, ref1[:8], atol=1e-5)
    assert jnp.allclose(o2s, ref2[:8], atol=1e-5)

    print("KERNEL_OK")
</pallas_src>

<mosaic_0001>
module attributes {stable_mosaic.version = 11 : i64} {
  func.func @_siamese_kernel(%arg0: i32, %arg1: memref<4x112xf32, #tpu.memory_space<vmem>>, %arg2: memref<4x112xf32, #tpu.memory_space<vmem>>, %arg3: memref<112x256xf32, #tpu.memory_space<vmem>>, %arg4: memref<1x256xf32, #tpu.memory_space<vmem>>, %arg5: memref<4x256xf32, #tpu.memory_space<vmem>>, %arg6: memref<4x256xf32, #tpu.memory_space<vmem>>) attributes {dimension_semantics = [#tpu.dimension_semantics<parallel>], iteration_bounds = array<i64: 1>, scalar_prefetch = 0 : i64, scratch_operands = 0 : i64, tpu.core_type = #tpu.core_type<tc>, window_params = [{transform_indices = @transform_0, window_bounds = array<i64: 4, 112>}, {transform_indices = @transform_1, window_bounds = array<i64: 4, 112>}, {pipeline_mode = #tpu.pipeline_mode<synchronous>, transform_indices = @transform_2, window_bounds = array<i64: 112, 256>}, {pipeline_mode = #tpu.pipeline_mode<synchronous>, transform_indices = @transform_3, window_bounds = array<i64: 1, 256>}, {transform_indices = @transform_4, window_bounds = array<i64: 4, 256>}, {transform_indices = @transform_5, window_bounds = array<i64: 4, 256>}]} {
    %c0 = arith.constant 0 : index
    %c0_0 = arith.constant 0 : index
    %0 = vector.load %arg3[%c0, %c0_0] : memref<112x256xf32, #tpu.memory_space<vmem>>, vector<112x256xf32>
    %c0_1 = arith.constant 0 : index
    %c0_2 = arith.constant 0 : index
    %1 = vector.load %arg4[%c0_1, %c0_2] : memref<1x256xf32, #tpu.memory_space<vmem>>, vector<1x256xf32>
    %c0_3 = arith.constant 0 : index
    %c0_4 = arith.constant 0 : index
    %2 = vector.load %arg1[%c0_3, %c0_4] : memref<4x112xf32, #tpu.memory_space<vmem>>, vector<4x112xf32>
    %cst = arith.constant dense<0.000000e+00> : vector<4x256xf32>
    %3 = tpu.matmul %2, %0, %cst {dimension_numbers = #tpu.dot_dimension_numbers<[1], [0], [0], [1], [0, 0, 1, 1], [], []>} : vector<4x112xf32>, vector<112x256xf32>, vector<4x256xf32> -> vector<4x256xf32>
    %4 = vector.broadcast %1 : vector<1x256xf32> to vector<4x256xf32>
    %5 = arith.addf %3, %4 : vector<4x256xf32>
    %c0_5 = arith.constant 0 : index
    %c0_6 = arith.constant 0 : index
    %6 = vector.load %arg5[%c0_5, %c0_6] : memref<4x256xf32, #tpu.memory_space<vmem>>, vector<4x256xf32>
    tpu.vector_store %arg5[%c0_5, %c0_6], %5 {strides = array<i32>} : memref<4x256xf32, #tpu.memory_space<vmem>>, vector<4x256xf32>,
    %c0_7 = arith.constant 0 : index
    %c0_8 = arith.constant 0 : index
    %7 = vector.load %arg2[%c0_7, %c0_8] : memref<4x112xf32, #tpu.memory_space<vmem>>, vector<4x112xf32>
    %cst_9 = arith.constant dense<0.000000e+00> : vector<4x256xf32>
    %8 = tpu.matmul %7, %0, %cst_9 {dimension_numbers = #tpu.dot_dimension_numbers<[1], [0], [0], [1], [0, 0, 1, 1], [], []>} : vector<4x112xf32>, vector<112x256xf32>, vector<4x256xf32> -> vector<4x256xf32>
    %9 = vector.broadcast %1 : vector<1x256xf32> to vector<4x256xf32>
    %10 = arith.addf %8, %9 : vector<4x256xf32>
    %c0_10 = arith.constant 0 : index
    %c0_11 = arith.constant 0 : index
    %11 = vector.load %arg6[%c0_10, %c0_11] : memref<4x256xf32, #tpu.memory_space<vmem>>, vector<4x256xf32>
    tpu.vector_store %arg6[%c0_10, %c0_11], %10 {strides = array<i32>} : memref<4x256xf32, #tpu.memory_space<vmem>>, vector<4x256xf32>,
    return
  }
  func.func @transform_0(%arg0: i32) -> (i32, i32) {
    %c0_i32 = arith.constant 0 : i32
    %c0_i32_0 = arith.constant 0 : i32
    return %arg0, %c0_i32 : i32, i32
  }
  func.func @transform_1(%arg0: i32) -> (i32, i32) {
    %c0_i32 = arith.constant 0 : i32
    %c0_i32_0 = arith.constant 0 : i32
    return %arg0, %c0_i32 : i32, i32
  }
  func.func @transform_2(%arg0: i32) -> (i32, i32) {
    %c0_i32 = arith.constant 0 : i32
    %c0_i32_0 = arith.constant 0 : i32
    %c0_i32_1 = arith.constant 0 : i32
    return %c0_i32, %c0_i32_0 : i32, i32
  }
  func.func @transform_3(%arg0: i32) -> (i32, i32) {
    %c0_i32 = arith.constant 0 : i32
    %c0_i32_0 = arith.constant 0 : i32
    %c0_i32_1 = arith.constant 0 : i32
    return %c0_i32, %c0_i32_0 : i32, i32
  }
  func.func @transform_4(%arg0: i32) -> (i32, i32) {
    %c0_i32 = arith.constant 0 : i32
    %c0_i32_0 = arith.constant 0 : i32
    return %arg0, %c0_i32 : i32, i32
  }
  func.func @transform_5(%arg0: i32) -> (i32, i32) {
    %c0_i32 = arith.constant 0 : i32
    %c0_i32_0 = arith.constant 0 : i32
    return %arg0, %c0_i32 : i32, i32
  }
}

</mosaic_0001>

<llo_original>
// kernel: tpu_custom_call.1
$region0: #{tpu_custom_call.1}
  #allocation0 [shape = 'u32[]', space=smem, size = 0x4, offset = 0x4, fixed_abs, tag = 'smem constant byte address 0x4 - core index']
  #allocation1 [shape = 'u32[144,128]{1,0:T(1,128)}', space=vmem, size = 0x12000, scoped, tag = 'internal scratch']
  %s0 = inlined_call_operand.hbm [shape: f32[4,112], index: 0, kind: input, shape index: {}]
  %s1 = inlined_call_operand.hbm [shape: f32[4,112], index: 1, kind: input, shape index: {}]
  %s2 = inlined_call_operand.hbm [shape: f32[112,256], index: 2, kind: input, shape index: {}]
  %s3 = inlined_call_operand.vmem [shape: f32[1,256], index: 3, kind: input, shape index: {}]
  %s4 = inlined_call_operand.hbm [shape: f32[4,256], index: 4, kind: output, shape index: {0}]
  %s5 = inlined_call_operand.hbm [shape: f32[4,256], index: 5, kind: output, shape index: {1}]
  %6 = xla_tuple %s4, %s5
  %s7 = sld [smem:[#allocation0]]
  $region46: #{tpu_custom_call.1} parent=0
    _
  %s9 = ssub.s32 1, %s7
  %s10 = scalar_select 0, %s9, %s7
  $region1: #{tpu_custom_call.1} parent=0
    #allocation2 [shape = 'u8[2048]{0}', space=vmem, size = 0x800, scoped, tag = 'input window, operand 0, single buffered']
    #allocation3 [shape = 's32[1]{0}', space=sflag, size = 0x4, scoped, tag = 'scoped memory for tpu_custom_call.1']
    #allocation4 [shape = 's32[1]{0}', space=sflag, size = 0x4, scoped, tag = 'scoped memory for tpu_custom_call.1']
    #allocation5 [shape = 'u8[2048]{0}', space=vmem, size = 0x800, scoped, tag = 'input window, operand 1, single buffered']
    #allocation6 [shape = 's32[1]{0}', space=sflag, size = 0x4, scoped, tag = 'scoped memory for tpu_custom_call.1']
    #allocation7 [shape = 'u8[114688]{0}', space=vmem, size = 0x1c000, scoped, tag = 'input window, operand 2, single buffered']
    #allocation8 [shape = 'u8[4096]{0}', space=vmem, size = 0x1000, scoped, tag = 'output window, operand 0, single buffered']
    #allocation9 [shape = 'u8[4096]{0}', space=vmem, size = 0x1000, scoped, tag = 'output window, operand 1, single buffered']
    #allocation10 [shape = 's32[1]{0}', space=sflag, size = 0x4, scoped, tag = 'scoped memory for tpu_custom_call.1']
    %11 = vsyncpa [#allocation3], 0
    %12 = vsyncpa [#allocation6], 0
    %13 = vsyncpa [#allocation4], 0
    %14 = vsyncpa [#allocation10], 0
    // Predicated region
    $region2: #{tpu_custom_call.1} parent=1 // pred_check
      _
    $region3: #{tpu_custom_call.1} parent=1 // pred_check_branch
      %16 = sbr.rel (0) target = $region5
    $region4: #{tpu_custom_call.1} parent=1 // pred_region
      %s18 = ssub.s32 64, 64
      %19 = vsyncadd [#allocation3], %s18
      %s21 = sshll.u32 [#allocation2], 4
      %s22 = int_to_ptr.vmem [resolvable:$true] %s21
      %24 = dma.hbm_to_vmem [thread:$0]  %s0, 64, %s22, [#allocation3]
    $region5: #{tpu_custom_call.1} parent=1 // pred_fallthru
      _
    // Predicated region
    $region6: #{tpu_custom_call.1} parent=1 // pred_check
      _
    $region7: #{tpu_custom_call.1} parent=1 // pred_check_branch
      %26 = sbr.rel (0) target = $region9
    $region8: #{tpu_custom_call.1} parent=1 // pred_region
      %s28 = ssub.s32 64, 64
      %29 = vsyncadd [#allocation6], %s28
      %s31 = sshll.u32 [#allocation5], 4
      %s32 = int_to_ptr.vmem [resolvable:$true] %s31
      %34 = dma.hbm_to_vmem [thread:$0]  %s1, 64, %s32, [#allocation6]
    $region9: #{tpu_custom_call.1} parent=1 // pred_fallthru
      _
    // Predicated region
    $region10: #{tpu_custom_call.1} parent=1 // pred_check
      _
    $region11: #{tpu_custom_call.1} parent=1 // pred_check_branch
      %36 = sbr.rel (0) target = $region13
    $region12: #{tpu_custom_call.1} parent=1 // pred_region
      %s38 = ssub.s32 3584, 3584
      %39 = vsyncadd [#allocation6], %s38
      %s40 = sshll.u32 [#allocation7], 4
      %s41 = int_to_ptr.vmem [resolvable:$true] %s40
      %46 = dma.hbm_to_vmem [thread:$0]  %s2, 3584, %s41, [#allocation6], 256, 256, 16
    $region13: #{tpu_custom_call.1} parent=1 // pred_fallthru
      _
    // Predicated region
    $region14: #{tpu_custom_call.1} parent=1 // pred_check
      _
    $region15: #{tpu_custom_call.1} parent=1 // pred_check_branch
      %48 = sbr.rel (0) target = $region17
    $region16: #{tpu_custom_call.1} parent=1 // pred_region
      _
    $region17: #{tpu_custom_call.1} parent=1 // pred_fallthru
      _
    // Predicated region
    $region18: #{tpu_custom_call.1} parent=1 // pred_check
      _
    $region19: #{tpu_custom_call.1} parent=1 // pred_check_branch
      %50 = sbr.rel (0) target = $region21
    $region20: #{tpu_custom_call.1} parent=1 // pred_region
      %51 = dma.done [#allocation3], 64
    $region21: #{tpu_custom_call.1} parent=1 // pred_fallthru
      _
    // Predicated region
    $region22: #{tpu_custom_call.1} parent=1 // pred_check
      _
    $region23: #{tpu_custom_call.1} parent=1 // pred_check_branch
      %53 = sbr.rel (0) target = $region25
    $region24: #{tpu_custom_call.1} parent=1 // pred_region
      %54 = dma.done [#allocation6], 64
    $region25: #{tpu_custom_call.1} parent=1 // pred_fallthru
      _
    // Predicated region
    $region26: #{tpu_custom_call.1} parent=1 // pred_check
      _
    $region27: #{tpu_custom_call.1} parent=1 // pred_check_branch
      %56 = sbr.rel (0) target = $region29
    $region28: #{tpu_custom_call.1} parent=1 // pred_region
      %57 = dma.done [#allocation6], 3584
    $region29: #{tpu_custom_call.1} parent=1 // pred_fallthru
      _
    %v58 = vld [vmem:[#allocation7] sm:$0xff]
    %v59 = vld [vmem:[#allocation7 + $0x8] sm:$0xff]
    %v60 = vld [vmem:[#allocation7 + $0x10] sm:$0xff]
    %v61 = vld [vmem:[#allocation7 + $0x18] sm:$0xff]
    %v62 = vld [vmem:[#allocation7 + $0x20] sm:$0xff]
    %v63 = vld [vmem:[#allocation7 + $0x28] sm:$0xff]
    %v64 = vld [vmem:[#allocation7 + $0x30] sm:$0xff]
    %v65 = vld [vmem:[#allocation7 + $0x38] sm:$0xff]
    %v66 = vld [vmem:[#allocation7 + $0x40] sm:$0xff]
    %v67 = vld [vmem:[#allocation7 + $0x48] sm:$0xff]
    %v68 = vld [vmem:[#allocation7 + $0x50] sm:$0xff]
    %v69 = vld [vmem:[#allocation7 + $0x58] sm:$0xff]
    %v70 = vld [vmem:[#allocation7 + $0x60] sm:$0xff]
    %v71 = vld [vmem:[#allocation7 + $0x68] sm:$0xff]
    %v72 = vld [vmem:[#allocation7 + $0x70] sm:$0xff]
    %v73 = vld [vmem:[#allocation7 + $0x78] sm:$0xff]
    %v74 = vld [vmem:[#allocation7 + $0x80] sm:$0xff]
    %v75 = vld [vmem:[#allocation7 + $0x88] sm:$0xff]
    %v76 = vld [vmem:[#allocation7 + $0x90] sm:$0xff]
    %v77 = vld [vmem:[#allocation7 + $0x98] sm:$0xff]
    %v78 = vld [vmem:[#allocation7 + $0xa0] sm:$0xff]
    %v79 = vld [vmem:[#allocation7 + $0xa8] sm:$0xff]
    %v80 = vld [vmem:[#allocation7 + $0xb0] sm:$0xff]
    %v81 = vld [vmem:[#allocation7 + $0xb8] sm:$0xff]
    %v82 = vld [vmem:[#allocation7 + $0xc0] sm:$0xff]
    %v83 = vld [vmem:[#allocation7 + $0xc8] sm:$0xff]
    %v84 = vld [vmem:[#allocation7 + $0xd0] sm:$0xff]
    %v85 = vld [vmem:[#allocation7 + $0xd8] sm:$0xff]
    %v86 = vld [vmem:[%s3] sm:$0x3]
    %v87 = vld [vmem:[#allocation2] sm:$0xf]
    %v89 = vlaneseq
    %v90 = vshrl.u32 %v89, 7
    %v91 = vsub.s32 0, %v90
    %v92 = vrot.slane %v86, %v91
    %v93 = vlaneseq
    %v94 = vshrl.u32 %v93, 7
    %v95 = vsub.s32 1, %v94
    %v96 = vrot.slane %v86, %v95
    %vm99 = vcmask 916480
    %v101 = vsel %vm99, %v87, 0
    %103 = vmatprep.subr.mxu0 %v59
    %104 = vmatpush1.msra.mxu0 %v58
    %105 = vmatprep.subr.mxu0 %v61
    %106 = vmatpush1.msra.mxu0 %v60
    %107 = vmatprep.subr.mxu0 %v63
    %108 = vmatpush1.msra.mxu0 %v62
    %109 = vmatprep.subr.mxu0 %v65
    %110 = vmatpush1.msra.mxu0 %v64
    %111 = vmatprep.subr.mxu0 %v67
    %112 = vmatpush1.msra.mxu0 %v66
    %113 = vmatprep.subr.mxu0 %v69
    %114 = vmatpush1.msra.mxu0 %v68
    %115 = vmatprep.subr.mxu0 %v71
    %116 = vmatpush1.msra.mxu0 %v70
    %117 = vmatprep.subr.mxu0 %v73
    %118 = vmatpush1.msra.mxu0 %v72
    %119 = vmatprep.subr.mxu0 %v75
    %120 = vmatpush1.msra.mxu0 %v74
    %121 = vmatprep.subr.mxu0 %v77
    %122 = vmatpush1.msra.mxu0 %v76
    %123 = vmatprep.subr.mxu0 %v79
    %124 = vmatpush1.msra.mxu0 %v78
    %125 = vmatprep.subr.mxu0 %v81
    %126 = vmatpush1.msra.mxu0 %v80
    %127 = vmatprep.subr.mxu0 %v83
    %128 = vmatpush1.msra.mxu0 %v82
    %129 = vmatprep.subr.mxu0 %v85
    %130 = vmatpush1.msra.mxu0 %v84
    %131 = vmatprep.subr.mxu0 0.0
    %132 = vmatpush1.msra.mxu0 0.0
    %133 = vmatprep.subr.mxu0 0.0
    %134 = vmatpush1.msra.mxu0 0.0
    %135 = vmatprep.subr.mxu0 0.0
    %136 = vmatpush1.msra.mxu0 0.0
    %137 = vmatprep.subr.mxu0 0.0
    %138 = vmatpush1.msra.mxu0 0.0
    %139 = vmatprep.subr.mxu0 0.0
    %140 = vmatpush1.msra.mxu0 0.0
    %141 = vmatprep.subr.mxu0 0.0
    %142 = vmatpush1.msra.mxu0 0.0
    %143 = vmatprep.subr.mxu0 0.0
    %144 = vmatpush1.msra.mxu0 0.0
    %145 = vmatprep.subr.mxu0 0.0
    %146 = vmatpush1.msra.mxu0 0.0
    %147 = vmatprep.subr.mxu0 0.0
    %148 = vmatpush1.msra.mxu0 0.0
    %149 = vmatprep.subr.mxu0 0.0
    %150 = vmatpush1.msra.mxu0 0.0
    %151 = vmatprep.subr.mxu0 0.0
    %152 = vmatpush1.msra.mxu0 0.0
    %153 = vmatprep.subr.mxu0 0.0
    %154 = vmatpush1.msra.mxu0 0.0
    %155 = vmatprep.subr.mxu0 0.0
    %156 = vmatpush1.msra.mxu0 0.0
    %157 = vmatprep.subr.mxu0 0.0
    %158 = vmatpush1.msra.mxu0 0.0
    %159 = vmatprep.subr.mxu0 0.0
    %160 = vmatpush1.msra.mxu0 0.0
    %161 = vmatprep.subr.mxu0 0.0
    %162 = vmatpush1.msra.mxu0 0.0
    %163 = vmatprep.subr.mxu0 0.0
    %164 = vmatpush1.msra.mxu0 0.0
    %165 = vmatprep.subr.mxu0 0.0
    %166 = vmatpush1.msra.mxu0 0.0
    %167 = vmatprep.mubr.f32.mxu0 0.0
    %168 = vmatmul.mubr.f32.gmra.mrb[0].mxu0 %v101
    %v169 = vpop.f32.mrb[0].mxu0
    %v170 = vadd.f32 %v92, %v169
    %v171 = vpop.f32.mrb[0].mxu0
    %v172 = vadd.f32 %v96, %v171
    %173 = vdwg.mxu0
    %v176 = vcombine.low %v170, %v172
    %178 = vst [vmem:[#allocation8] sm:$0xff] %v176
    %v179 = vld [vmem:[#allocation5] sm:$0xf]
    %v181 = vsel %vm99, %v179, 0
    %183 = vmatprep.subr.mxu0 %v59
    %184 = vmatpush1.msra.mxu0 %v58
    %185 = vmatprep.subr.mxu0 %v61
    %186 = vmatpush1.msra.mxu0 %v60
    %187 = vmatprep.subr.mxu0 %v63
    %188 = vmatpush1.msra.mxu0 %v62
    %189 = vmatprep.subr.mxu0 %v65
    %190 = vmatpush1.msra.mxu0 %v64
    %191 = vmatprep.subr.mxu0 %v67
    %192 = vmatpush1.msra.mxu0 %v66
    %193 = vmatprep.subr.mxu0 %v69
    %194 = vmatpush1.msra.mxu0 %v68
    %195 = vmatprep.subr.mxu0 %v71
    %196 = vmatpush1.msra.mxu0 %v70
    %197 = vmatprep.subr.mxu0 %v73
    %198 = vmatpush1.msra.mxu0 %v72
    %199 = vmatprep.subr.mxu0 %v75
    %200 = vmatpush1.msra.mxu0 %v74
    %201 = vmatprep.subr.mxu0 %v77
    %202 = vmatpush1.msra.mxu0 %v76
    %203 = vmatprep.subr.mxu0 %v79
    %204 = vmatpush1.msra.mxu0 %v78
    %205 = vmatprep.subr.mxu0 %v81
    %206 = vmatpush1.msra.mxu0 %v80
    %207 = vmatprep.subr.mxu0 %v83
    %208 = vmatpush1.msra.mxu0 %v82
    %209 = vmatprep.subr.mxu0 %v85
    %210 = vmatpush1.msra.mxu0 %v84
    %211 = vmatprep.subr.mxu0 0.0
    %212 = vmatpush1.msra.mxu0 0.0
    %213 = vmatprep.subr.mxu0 0.0
    %214 = vmatpush1.msra.mxu0 0.0
    %215 = vmatprep.subr.mxu0 0.0
    %216 = vmatpush1.msra.mxu0 0.0
    %217 = vmatprep.subr.mxu0 0.0
    %218 = vmatpush1.msra.mxu0 0.0
    %219 = vmatprep.subr.mxu0 0.0
    %220 = vmatpush1.msra.mxu0 0.0
    %221 = vmatprep.subr.mxu0 0.0
    %222 = vmatpush1.msra.mxu0 0.0
    %223 = vmatprep.subr.mxu0 0.0
    %224 = vmatpush1.msra.mxu0 0.0
    %225 = vmatprep.subr.mxu0 0.0
    %226 = vmatpush1.msra.mxu0 0.0
    %227 = vmatprep.subr.mxu0 0.0
    %228 = vmatpush1.msra.mxu0 0.0
    %229 = vmatprep.subr.mxu0 0.0
    %230 = vmatpush1.msra.mxu0 0.0
    %231 = vmatprep.subr.mxu0 0.0
    %232 = vmatpush1.msra.mxu0 0.0
    %233 = vmatprep.subr.mxu0 0.0
    %234 = vmatpush1.msra.mxu0 0.0
    %235 = vmatprep.subr.mxu0 0.0
    %236 = vmatpush1.msra.mxu0 0.0
    %237 = vmatprep.subr.mxu0 0.0
    %238 = vmatpush1.msra.mxu0 0.0
    %239 = vmatprep.subr.mxu0 0.0
    %240 = vmatpush1.msra.mxu0 0.0
    %241 = vmatprep.subr.mxu0 0.0
    %242 = vmatpush1.msra.mxu0 0.0
    %243 = vmatprep.subr.mxu0 0.0
    %244 = vmatpush1.msra.mxu0 0.0
    %245 = vmatprep.subr.mxu0 0.0
    %246 = vmatpush1.msra.mxu0 0.0
    %247 = vmatprep.mubr.f32.mxu0 0.0
    %248 = vmatmul.mubr.f32.gmra.mrb[0].mxu0 %v181
    %v249 = vpop.f32.mrb[0].mxu0
    %v250 = vadd.f32 %v92, %v249
    %v251 = vpop.f32.mrb[0].mxu0
    %v252 = vadd.f32 %v96, %v251
    %253 = vdwg.mxu0
    %v256 = vcombine.low %v250, %v252
    %258 = vst [vmem:[#allocation9] sm:$0xff] %v256
    // Predicated region
    $region30: #{tpu_custom_call.1} parent=1 // pred_check
      _
    $region31: #{tpu_custom_call.1} parent=1 // pred_check_branch
      %260 = sbr.rel (0) target = $region33
    $region32: #{tpu_custom_call.1} parent=1 // pred_region
      %s262 = ssub.s32 128, 128
      %263 = vsyncadd [#allocation4], %s262
      %s265 = sshll.u32 [#allocation8], 4
      %s266 = int_to_ptr.vmem [resolvable:$true] %s265
      %268 = dma.vmem_to_hbm [thread:$0]  %s266, 128, %s4, [#allocation4]
    $region33: #{tpu_custom_call.1} parent=1 // pred_fallthru
      _
    // Predicated region
    $region34: #{tpu_custom_call.1} parent=1 // pred_check
      _
    $region35: #{tpu_custom_call.1} parent=1 // pred_check_branch
      %270 = sbr.rel (0) target = $region37
    $region36: #{tpu_custom_call.1} parent=1 // pred_region
      %s272 = ssub.s32 128, 128
      %273 = vsyncadd [#allocation10], %s272
      %s275 = sshll.u32 [#allocation9], 4
      %s276 = int_to_ptr.vmem [resolvable:$true] %s275
      %278 = dma.vmem_to_hbm [thread:$0]  %s276, 128, %s5, [#allocation10]
    $region37: #{tpu_custom_call.1} parent=1 // pred_fallthru
      _
    // Predicated region
    $region38: #{tpu_custom_call.1} parent=1 // pred_check
      _
    $region39: #{tpu_custom_call.1} parent=1 // pred_check_branch
      %280 = sbr.rel (0) target = $region41
    $region40: #{tpu_custom_call.1} parent=1 // pred_region
      %281 = dma.done [#allocation4], 128
    $region41: #{tpu_custom_call.1} parent=1 // pred_fallthru
      _
    // Predicated region
    $region42: #{tpu_custom_call.1} parent=1 // pred_check
      _
    $region43: #{tpu_custom_call.1} parent=1 // pred_check_branch
      %283 = sbr.rel (0) target = $region45
    $region44: #{tpu_custom_call.1} parent=1 // pred_region
      %284 = dma.done [#allocation10], 128
    $region45: #{tpu_custom_call.1} parent=1 // pred_fallthru
      _
    %285 = vsyncpa [#allocation3], 1
    %286 = vsyncpa [#allocation6], 1
    %287 = vsyncpa [#allocation4], 1
    %288 = vsyncpa [#allocation10], 1

</llo_original>
